<compile_context>
chip_gen: v5e
topology: v5e:2x2
jax: 0.10.0
libtpu: 0.0.40
codegen_flags: <defaults>
</compile_context>

<pallas_src>
import functools

import jax
import jax.numpy as jnp
from jax.experimental import pallas as pl
from jax.experimental.pallas import tpu as pltpu


def actnorm_kernel(x_ref, y_ref, logs_ref, *, n):
    """x_ref: (batch, nsq_blk, lchunk) block; per-channel stats over axes (0, 2)."""
    x = x_ref[...].astype(jnp.float32)

    # Pass 1: per-channel mean over batch (axis 0, cheap VPU accumulate across
    # vregs) and time (axis 1 of the partial, cross-lane XLU reduce).
    s0 = jnp.sum(x, axis=0)                               # (nsq_blk, lchunk)
    mean = jnp.sum(s0, axis=1, keepdims=True) / n         # (nsq_blk, 1)

    centered = x - mean[None, :, :]                       # (batch, nsq_blk, lchunk)

    # Pass 2: unbiased variance (torch.std default ddof=1).
    sq0 = jnp.sum(centered * centered, axis=0)            # (nsq_blk, lchunk)
    var = jnp.sum(sq0, axis=1, keepdims=True) / max(n - 1, 1)
    std = jnp.sqrt(var)
    denom = std + 1e-7                                     # (nsq_blk, 1)

    # affine: exp(logs) * (h + m) == (1/denom) * centered
    scale = (1.0 / denom)[None, :, :]
    y_ref[...] = (centered * scale).astype(y_ref.dtype)

    # per-channel logs; logdet = sum(logs) * lchunk is done in the wrapper
    logs_ref[...] = -jnp.log(denom)


def _choose_nsq_block(batch, nsq, lchunk, budget_bytes=2 * 1024 * 1024):
    """Largest channel block that divides nsq, is a multiple of 8 (sublane rule)
    or the full nsq, and keeps one f32 block under ~budget_bytes."""
    per_ch_bytes = batch * lchunk * 4
    if nsq % 8 != 0:
        return nsq  # full-extent sublane block (small nsq case)
    max_ch = max(8, (budget_bytes // max(per_ch_bytes, 1)) // 8 * 8)
    blk = min(nsq, max_ch)
    while nsq % blk != 0:
        blk -= 8
    return blk


def actnorm_forward(h, nsq_block=None):
    """h: (batch, nsq, lchunk) -> (h_out same shape, logdet scalar)."""
    b, nsq, lchunk = h.shape
    n = b * lchunk
    if nsq_block is None:
        nsq_block = _choose_nsq_block(b, nsq, lchunk)
    assert nsq % nsq_block == 0

    kernel = functools.partial(actnorm_kernel, n=n)
    y, logs = pl.pallas_call(
        kernel,
        out_shape=(
            jax.ShapeDtypeStruct((b, nsq, lchunk), h.dtype),
            jax.ShapeDtypeStruct((nsq, 1), jnp.float32),
        ),
        grid=(nsq // nsq_block,),
        in_specs=[pl.BlockSpec((b, nsq_block, lchunk), lambda c: (0, c, 0))],
        out_specs=(
            pl.BlockSpec((b, nsq_block, lchunk), lambda c: (0, c, 0)),
            pl.BlockSpec((nsq_block, 1), lambda c: (c, 0)),
        ),
        compiler_params=pltpu.CompilerParams(
            dimension_semantics=("parallel",),
        ),
    )(h)

    logdet = jnp.sum(logs) * jnp.float32(lchunk)
    return y, logdet


def actnorm_reference(h):
    """Plain-JAX reference mirroring the PyTorch code (data_init path)."""
    b, nsq, lchunk = h.shape
    flat = jnp.transpose(h, (1, 0, 2)).reshape(nsq, -1)
    mean = flat.mean(axis=1)
    std = jnp.std(flat, axis=1, ddof=1)  # torch.std -> unbiased
    m = (-mean).reshape(1, nsq, 1)
    logs = jnp.log(1.0 / (std + 1e-7)).reshape(1, nsq, 1)
    out = jnp.exp(logs) * (h + m)
    logdet = logs.sum() * lchunk
    return out, logdet


if __name__ == "__main__":
    key0, key1 = jax.random.split(jax.random.PRNGKey(0))

    # Small shape consistent with the module: (batch, nsq, lchunk).
    batch, nsq, lchunk = 2, 4, 16
    h = jax.random.normal(key0, (batch, nsq, lchunk), dtype=jnp.float32) * 2.5 + 1.0

    y, logdet = actnorm_forward(h)
    y = jax.block_until_ready(y)
    logdet = jax.block_until_ready(logdet)

    y_ref, ld_ref = actnorm_reference(h)
    assert jnp.allclose(y, y_ref, atol=1e-5, rtol=1e-5), "output mismatch"
    assert jnp.allclose(logdet, ld_ref, atol=1e-5, rtol=1e-5), "logdet mismatch"

    # Second check: exercise the channel grid (>1 block) with 128-aligned lanes.
    h2 = jax.random.normal(key1, (2, 16, 128), dtype=jnp.float32) * 0.7 - 0.3
    y2, ld2 = actnorm_forward(h2, nsq_block=8)
    y2 = jax.block_until_ready(y2)
    ld2 = jax.block_until_ready(ld2)

    y2_ref, ld2_ref = actnorm_reference(h2)
    assert jnp.allclose(y2, y2_ref, atol=1e-5, rtol=1e-5), "gridded output mismatch"
    assert jnp.allclose(ld2, ld2_ref, atol=1e-5, rtol=1e-5), "gridded logdet mismatch"

    print("KERNEL_OK")
</pallas_src>

<mosaic_0001>
module attributes {stable_mosaic.version = 11 : i64} {
  func.func @actnorm_kernel(%arg0: i32, %arg1: memref<2x4x16xf32, #tpu.memory_space<vmem>>, %arg2: memref<2x4x16xf32, #tpu.memory_space<vmem>>, %arg3: memref<4x1xf32, #tpu.memory_space<vmem>>) attributes {dimension_semantics = [#tpu.dimension_semantics<parallel>], iteration_bounds = array<i64: 1>, scalar_prefetch = 0 : i64, scratch_operands = 0 : i64, tpu.core_type = #tpu.core_type<tc>, window_params = [{transform_indices = @transform_0, window_bounds = array<i64: 2, 4, 16>}, {transform_indices = @transform_1, window_bounds = array<i64: 2, 4, 16>}, {transform_indices = @transform_2, window_bounds = array<i64: 4, 1>}]} {
    %c0 = arith.constant 0 : index
    %c0_0 = arith.constant 0 : index
    %c0_1 = arith.constant 0 : index
    %0 = vector.load %arg1[%c0, %c0_0, %c0_1] : memref<2x4x16xf32, #tpu.memory_space<vmem>>, vector<2x4x16xf32>
    %cst = arith.constant dense<0.000000e+00> : vector<4x16xf32>
    %1 = vector.multi_reduction <add>, %0, %cst [0] : vector<2x4x16xf32> to vector<4x16xf32>
    %cst_2 = arith.constant dense<0.000000e+00> : vector<4xf32>
    %2 = vector.multi_reduction <add>, %1, %cst_2 [1] : vector<4x16xf32> to vector<4xf32>
    %3 = vector.shape_cast %2 : vector<4xf32> to vector<4x1xf32>
    %cst_3 = arith.constant 3.200000e+01 : f32
    %4 = vector.broadcast %cst_3 : f32 to vector<4x1xf32>
    %5 = arith.divf %3, %4 : vector<4x1xf32>
    %6 = vector.shape_cast %5 : vector<4x1xf32> to vector<1x4x1xf32>
    %7 = vector.broadcast %6 : vector<1x4x1xf32> to vector<2x4x16xf32>
    %8 = arith.subf %0, %7 : vector<2x4x16xf32>
    %9 = arith.mulf %8, %8 : vector<2x4x16xf32>
    %cst_4 = arith.constant dense<0.000000e+00> : vector<4x16xf32>
    %10 = vector.multi_reduction <add>, %9, %cst_4 [0] : vector<2x4x16xf32> to vector<4x16xf32>
    %cst_5 = arith.constant dense<0.000000e+00> : vector<4xf32>
    %11 = vector.multi_reduction <add>, %10, %cst_5 [1] : vector<4x16xf32> to vector<4xf32>
    %12 = vector.shape_cast %11 : vector<4xf32> to vector<4x1xf32>
    %cst_6 = arith.constant 3.100000e+01 : f32
    %13 = vector.broadcast %cst_6 : f32 to vector<4x1xf32>
    %14 = arith.divf %12, %13 : vector<4x1xf32>
    %15 = math.sqrt %14 : vector<4x1xf32>
    %cst_7 = arith.constant 1.000000e-07 : f32
    %16 = vector.broadcast %cst_7 : f32 to vector<4x1xf32>
    %17 = arith.addf %15, %16 : vector<4x1xf32>
    %cst_8 = arith.constant 1.000000e+00 : f32
    %18 = vector.broadcast %cst_8 : f32 to vector<4x1xf32>
    %19 = arith.divf %18, %17 : vector<4x1xf32>
    %20 = vector.shape_cast %19 : vector<4x1xf32> to vector<1x4x1xf32>
    %21 = vector.broadcast %20 : vector<1x4x1xf32> to vector<2x4x16xf32>
    %22 = arith.mulf %8, %21 : vector<2x4x16xf32>
    %c0_9 = arith.constant 0 : index
    %c0_10 = arith.constant 0 : index
    %c0_11 = arith.constant 0 : index
    %23 = vector.load %arg2[%c0_9, %c0_10, %c0_11] : memref<2x4x16xf32, #tpu.memory_space<vmem>>, vector<2x4x16xf32>
    tpu.vector_store %arg2[%c0_9, %c0_10, %c0_11], %22 {strides = array<i32>} : memref<2x4x16xf32, #tpu.memory_space<vmem>>, vector<2x4x16xf32>,
    %24 = math.log %17 : vector<4x1xf32>
    %cst_12 = arith.constant 0.000000e+00 : f32
    %25 = vector.broadcast %cst_12 : f32 to vector<4x1xf32>
    %26 = arith.subf %25, %24 : vector<4x1xf32>
    %c0_13 = arith.constant 0 : index
    %c0_14 = arith.constant 0 : index
    %27 = vector.load %arg3[%c0_13, %c0_14] : memref<4x1xf32, #tpu.memory_space<vmem>>, vector<4x1xf32>
    tpu.vector_store %arg3[%c0_13, %c0_14], %26 {strides = array<i32>} : memref<4x1xf32, #tpu.memory_space<vmem>>, vector<4x1xf32>,
    return
  }
  func.func @transform_0(%arg0: i32) -> (i32, i32, i32) {
    %c0_i32 = arith.constant 0 : i32
    %c0_i32_0 = arith.constant 0 : i32
    %c0_i32_1 = arith.constant 0 : i32
    return %c0_i32, %arg0, %c0_i32_0 : i32, i32, i32
  }
  func.func @transform_1(%arg0: i32) -> (i32, i32, i32) {
    %c0_i32 = arith.constant 0 : i32
    %c0_i32_0 = arith.constant 0 : i32
    %c0_i32_1 = arith.constant 0 : i32
    return %c0_i32, %arg0, %c0_i32_0 : i32, i32, i32
  }
  func.func @transform_2(%arg0: i32) -> (i32, i32) {
    %c0_i32 = arith.constant 0 : i32
    %c0_i32_0 = arith.constant 0 : i32
    return %arg0, %c0_i32 : i32, i32
  }
}

</mosaic_0001>

<llo_original>
// kernel: tpu_custom_call.1
$region0: #{tpu_custom_call.1}
  #allocation0 [shape = 'u32[]', space=smem, size = 0x4, offset = 0x4, fixed_abs, tag = 'smem constant byte address 0x4 - core index']
  #allocation1 [shape = 'u32[72,128]{1,0:T(1,128)}', space=vmem, size = 0x9000, scoped, tag = 'internal scratch']
  %s0 = inlined_call_operand.hbm [shape: f32[2,4,16], index: 0, kind: input, shape index: {}]
  %s1 = inlined_call_operand.hbm [shape: f32[2,4,16], index: 1, kind: output, shape index: {0}]
  %s2 = inlined_call_operand.vmem [shape: f32[4,1], index: 2, kind: output, shape index: {1}]
  %3 = xla_tuple %s1, %s2
  %s4 = sld [smem:[#allocation0]]
  $region26: #{tpu_custom_call.1} parent=0
    _
  %s6 = ssub.s32 1, %s4
  %s7 = scalar_select 0, %s6, %s4
  $region1: #{tpu_custom_call.1} parent=0
    #allocation2 [shape = 'u8[4096]{0}', space=vmem, size = 0x1000, scoped, tag = 'input window, operand 0, single buffered']
    #allocation3 [shape = 's32[1]{0}', space=sflag, size = 0x4, scoped, tag = 'scoped memory for tpu_custom_call.1']
    #allocation4 [shape = 's32[1]{0}', space=sflag, size = 0x4, scoped, tag = 'scoped memory for tpu_custom_call.1']
    #allocation5 [shape = 'u8[4096]{0}', space=vmem, size = 0x1000, scoped, tag = 'output window, operand 0, single buffered']
    %8 = vsyncpa [#allocation3], 0
    %9 = vsyncpa [#allocation4], 0
    // Predicated region
    $region2: #{tpu_custom_call.1} parent=1 // pred_check
      _
    $region3: #{tpu_custom_call.1} parent=1 // pred_check_branch
      %11 = sbr.rel (0) target = $region5
    $region4: #{tpu_custom_call.1} parent=1 // pred_region
      %13 = vsyncadd [#allocation3], 0
      %s14 = sshll.u32 %s0, 4
      %s15 = int_to_ptr.hbm [resolvable:$true] %s14
      %s16 = sshll.u32 [#allocation2], 4
      %s17 = int_to_ptr.vmem [resolvable:$true] %s16
      %22 = dma.hbm_to_vmem [thread:$0]  %s15, 128, %s17, [#allocation3], 64, 64, 4
    $region5: #{tpu_custom_call.1} parent=1 // pred_fallthru
      _
    // Predicated region
    $region6: #{tpu_custom_call.1} parent=1 // pred_check
      _
    $region7: #{tpu_custom_call.1} parent=1 // pred_check_branch
      %24 = sbr.rel (0) target = $region9
    $region8: #{tpu_custom_call.1} parent=1 // pred_region
      %26 = dma.done [#allocation3], 128
    $region9: #{tpu_custom_call.1} parent=1 // pred_fallthru
      _
    %v27 = vld [vmem:[#allocation2] sm:$0xf]
    %v28 = vld [vmem:[#allocation2 + $0x4] sm:$0xf]
    %vm29 = vcmask 125952
    %v30 = vsel %vm29, %v27, 0.0
    %v31 = vsel %vm29, %v28, 0.0
    %v32 = vadd.f32 %v30, %v31
    %v33 = vsel %vm29, %v32, 0.0
    %34 = vadd.xlane.f32.xlu0 %v33
    %v35 = vpop.xlane.xlu0 %34
    %v36 = vrcp.pop 32.0
    %v37 = vmul.f32 32.0, %v36
    %v38 = vsub.f32 1.0, %v37
    %v39 = vmul.f32 %v36, %v38
    %v40 = vadd.f32 %v36, %v39
    %vm41 = vweird.f32 %v36
    %v42 = vsel %vm41, %v36, %v40
    %v43 = vmul.f32 %v35, %v42
    %v44 = vsub.f32 %v27, %v43
    %v45 = vsub.f32 %v28, %v43
    %v46 = vmul.f32 %v44, %v44
    %v47 = vmul.f32 %v45, %v45
    %v48 = vsel %vm29, %v46, 0.0
    %v49 = vsel %vm29, %v47, 0.0
    %v50 = vadd.f32 %v48, %v49
    %v51 = vsel %vm29, %v50, 0.0
    %52 = vadd.xlane.f32.xlu0 %v51
    %v53 = vpop.xlane.xlu0 %52
    %v54 = vrcp.pop 31.0
    %v55 = vmul.f32 31.0, %v54
    %v56 = vsub.f32 1.0, %v55
    %v57 = vmul.f32 %v54, %v56
    %v58 = vadd.f32 %v54, %v57
    %vm59 = vweird.f32 %v54
    %v60 = vsel %vm59, %v54, %v58
    %v61 = vmul.f32 %v53, %v60
    %v62 = vrsqrt.pop %v61
    %v63 = vmul.f32 %v62, %v61
    %v64 = vmul.f32 %v63, %v62
    %v65 = vmul.f32 0.5, %v64
    %v66 = vsub.f32 1.5, %v65
    %v67 = vmul.f32 %v62, %v66
    %v68 = vmul.f32 %v61, %v67
    %vm69 = vcmp.eq.f32.partialorder %v61, inf
    %v70 = vsel %vm69, %v61, %v68
    %vm71 = vcmp.eq.f32.partialorder %v61, 0.0
    %v72 = vand.u32 %v61, 2147483648
    %v73 = vsel %vm71, %v72, %v70
    %v74 = vadd.f32 %v73, 1e-07
    %v75 = vrcp.pop %v74
    %v76 = vmul.f32 %v74, %v75
    %v77 = vsub.f32 1.0, %v76
    %v78 = vmul.f32 %v75, %v77
    %v79 = vadd.f32 %v75, %v78
    %vm80 = vweird.f32 %v74
    %vm81 = vweird.f32 %v75
    %vm82 = vmor %vm80, %vm81
    %v83 = vsel %vm82, %v75, %v79
    %v84 = vand.u32 2147483647, %v74
    %vm85 = vcmp.eq.f32.partialorder %v84, 8.507059e+37
    %v86 = vand.u32 %v74, 2147483648
    %v87 = vor.u32 1.1754944e-38, %v86
    %v88 = vsel %vm85, %v87, %v83
    %v89 = vmul.f32 1.0, %v88
    %v90 = vmul.f32 %v44, %v89
    %v91 = vmul.f32 %v45, %v89
    %92 = vst.msk [vmem:[#allocation5] sm:$0xf] %vm29, %v90
    %93 = vst.msk [vmem:[#allocation5 + $0x4] sm:$0xf] %vm29, %v91
    %v94 = vlog2.pop %v74
    %v95 = vmul.f32 %v94, 0.6931472
    %v96 = vsub.f32 0.0, %v95
    %vm97 = vcmask 3072
    %98 = vst.msk [vmem:[%s2] sm:$0xf] %vm97, %v96
    // Predicated region
    $region10: #{tpu_custom_call.1} parent=1 // pred_check
      _
    $region11: #{tpu_custom_call.1} parent=1 // pred_check_branch
      %100 = sbr.rel (0) target = $region13
    $region12: #{tpu_custom_call.1} parent=1 // pred_region
      %102 = vsyncadd [#allocation4], 0
      %s103 = sshll.u32 [#allocation5], 4
      %s104 = int_to_ptr.vmem [resolvable:$true] %s103
      %s105 = sshll.u32 %s1, 4
      %s106 = int_to_ptr.hbm [resolvable:$true] %s105
      %111 = dma.vmem_to_hbm [thread:$0]  %s104, 128, %s106, [#allocation4], 64, 64, 4
    $region13: #{tpu_custom_call.1} parent=1 // pred_fallthru
      _
    // Predicated region
    $region14: #{tpu_custom_call.1} parent=1 // pred_check
      _
    $region15: #{tpu_custom_call.1} parent=1 // pred_check_branch
      %113 = sbr.rel (0) target = $region17
    $region16: #{tpu_custom_call.1} parent=1 // pred_region
      _
    $region17: #{tpu_custom_call.1} parent=1 // pred_fallthru
      _
    // Predicated region
    $region18: #{tpu_custom_call.1} parent=1 // pred_check
      _
    $region19: #{tpu_custom_call.1} parent=1 // pred_check_branch
      %115 = sbr.rel (0) target = $region21
    $region20: #{tpu_custom_call.1} parent=1 // pred_region
      %117 = dma.done [#allocation4], 128
    $region21: #{tpu_custom_call.1} parent=1 // pred_fallthru
      _
    // Predicated region
    $region22: #{tpu_custom_call.1} parent=1 // pred_check
      _
    $region23: #{tpu_custom_call.1} parent=1 // pred_check_branch
      %119 = sbr.rel (0) target = $region25
    $region24: #{tpu_custom_call.1} parent=1 // pred_region
      _
    $region25: #{tpu_custom_call.1} parent=1 // pred_fallthru
      _
    %120 = vsyncpa [#allocation3], 1
    %121 = vsyncpa [#allocation4], 1

</llo_original>
